<compile_context>
chip_gen: v7x
topology: tpu7x:2x2x1
jax: 0.10.0
libtpu: 0.0.40
codegen_flags: <defaults>
</compile_context>

<pallas_src>
import functools
import math

import jax
import jax.numpy as jnp
from jax import lax
from jax.experimental import pallas as pl
from jax.experimental.pallas import tpu as pltpu


ROW_TILE = 256                       # base row tile (multiple of 8 and 128)
MAX_K_TILE = 2048                    # deep reduction tile for the A stream
_VMEM_LIMIT = 48 * 1024 * 1024       # cap; actual working sets are a few MiB
                                     # (<= ~48 MiB keeps v7x's 64 MiB/TC safe)


def _round_up(x, m):
    return ((x + m - 1) // m) * m


def _pick_tile(n_pad, cap):
    """Largest tile in {2048,1024,512,256} that divides n_pad and is <= cap."""
    for cand in (2048, 1024, 512, 256):
        if cand <= cap and n_pad % cand == 0:
            return cand
    return min(n_pad, ROW_TILE)


def _pick_row_tile(n_pad):
    cap = MAX_K_TILE
    if n_pad >= 2 * ROW_TILE:
        cap = min(cap, n_pad // 2)   # keep >=2 blocks on the parallel axis (v7x)
    return _pick_tile(n_pad, cap)


# ----------------------------------------------------------------------------
# Kernel 1: fused per-layer projection  h @ [W_gcn|Wq|Wk|Wv] + b  (lane-dense,
#           bf16 output so the 4x-wide writeback is halved)
# ----------------------------------------------------------------------------
def fused_proj_kernel(h_ref, w_ref, b_ref, o_ref):
    h = h_ref[...].astype(jnp.bfloat16)            # bf16 into the MXU, f32 acc
    acc = jnp.dot(h, w_ref[...], preferred_element_type=jnp.float32) + b_ref[...]
    o_ref[...] = acc.astype(jnp.bfloat16)


def pallas_fused_proj(h, w_all_bf16, b_all):
    n_pad, d_in = h.shape
    d_out = w_all_bf16.shape[1]
    tm = _pick_row_tile(n_pad)
    return pl.pallas_call(
        fused_proj_kernel,
        out_shape=jax.ShapeDtypeStruct((n_pad, d_out), jnp.bfloat16),
        grid=(n_pad // tm,),
        in_specs=[pl.BlockSpec((tm, d_in), lambda i: (i, 0)),
                  pl.BlockSpec((d_in, d_out), lambda i: (0, 0)),
                  pl.BlockSpec((1, d_out), lambda i: (0, 0))],
        out_specs=pl.BlockSpec((tm, d_out), lambda i: (i, 0)),
        compiler_params=pltpu.CompilerParams(
            dimension_semantics=("parallel",),
            vmem_limit_bytes=_VMEM_LIMIT),
    )(h, w_all_bf16, b_all)


# ----------------------------------------------------------------------------
# Kernel 2: block-sparse tiled A_norm @ hw with fused
#           (x1+x2)/2 + residual + BN(eval) + ReLU epilogue
# ----------------------------------------------------------------------------
def gcn_combine_kernel(klo_ref, khi_ref, a_ref, hw_ref, x2_ref, hp_ref,
                       g_ref, b_ref, o_ref, acc_ref, *, alpha, bn_scale):
    i = pl.program_id(0)
    k = pl.program_id(1)

    @pl.when(k == 0)
    def _():
        acc_ref[...] = jnp.zeros_like(acc_ref)

    # Accumulate only k-blocks inside this row tile's nonzero-column range.
    @pl.when((k >= klo_ref[i]) & (k <= khi_ref[i]))
    def _():
        acc_ref[...] += jnp.dot(a_ref[...], hw_ref[...],
                                preferred_element_type=jnp.float32)

    @pl.when(k == pl.num_programs(1) - 1)
    def _():
        x = (acc_ref[...] + x2_ref[...]) * 0.5            # (x1 + x2) / 2
        x = alpha * x + (1.0 - alpha) * hp_ref[...]       # residual
        x = x * bn_scale * g_ref[...] + b_ref[...]        # BatchNorm1d (eval, init stats)
        o_ref[...] = jnp.maximum(x, 0.0)                  # ReLU; Dropout == identity
        # TODO(synk): fuse the NEXT layer's projection here to make the main
        # store 128-lane dense and drop one full [N, D] HBM round trip.


def pallas_gcn_combine(a_norm_bf16, hw_bf16, x2, h_prev, gamma, beta,
                       klo, khi, *, alpha, bn_eps=1e-5):
    n_pad = a_norm_bf16.shape[0]
    d = hw_bf16.shape[1]
    t_m = min(ROW_TILE, n_pad)
    t_k = _pick_tile(n_pad, MAX_K_TILE)
    bn_scale = 1.0 / math.sqrt(1.0 + bn_eps)
    kern = functools.partial(gcn_combine_kernel, alpha=alpha, bn_scale=bn_scale)

    def _clamped_k(k, klo_ref, khi_ref, i):
        # Out-of-range grid steps map to a boundary block -> the block index
        # repeats and Pallas skips the re-DMA; the accumulate is gated off.
        return jnp.minimum(jnp.maximum(k, klo_ref[i]), khi_ref[i])

    grid_spec = pltpu.PrefetchScalarGridSpec(
        num_scalar_prefetch=2,
        grid=(n_pad // t_m, n_pad // t_k),
        in_specs=[
            pl.BlockSpec((t_m, t_k),
                         lambda i, k, klo, khi: (i, _clamped_k(k, klo, khi, i))),
            pl.BlockSpec((t_k, d),
                         lambda i, k, klo, khi: (_clamped_k(k, klo, khi, i), 0)),
            pl.BlockSpec((t_m, d), lambda i, k, klo, khi: (i, 0)),
            pl.BlockSpec((t_m, d), lambda i, k, klo, khi: (i, 0)),
            pl.BlockSpec((1, d), lambda i, k, klo, khi: (0, 0)),
            pl.BlockSpec((1, d), lambda i, k, klo, khi: (0, 0)),
        ],
        out_specs=pl.BlockSpec((t_m, d), lambda i, k, klo, khi: (i, 0)),
        scratch_shapes=[pltpu.VMEM((t_m, d), jnp.float32)],
    )
    return pl.pallas_call(
        kern,
        out_shape=jax.ShapeDtypeStruct((n_pad, d), jnp.float32),
        grid_spec=grid_spec,
        compiler_params=pltpu.CompilerParams(
            dimension_semantics=("parallel", "arbitrary"),
            vmem_limit_bytes=_VMEM_LIMIT),
    )(klo, khi, a_norm_bf16, hw_bf16, x2, h_prev, gamma, beta)


# ----------------------------------------------------------------------------
# Kernel 3: DIFFormer full_attention_conv, G graphs per grid step (bf16 q/k/v)
# ----------------------------------------------------------------------------
def difformer_attn_kernel(q_ref, k_ref, v_ref, m_ref, o_ref):
    q = q_ref[...].astype(jnp.float32)               # (G, M, D)
    k = k_ref[...].astype(jnp.float32)
    v = v_ref[...]                                   # bf16 (G, M, D)
    m = m_ref[...]                                   # (G, M, 1) float {0,1}

    # L2 normalize over the feature dim in f32 (torch: x / norm(x, p=2, dim=1)).
    # All-zero padded rows stay exactly zero -> implicit mask in every sum.
    qn = (q * lax.rsqrt(jnp.sum(q * q, axis=-1, keepdims=True) + 1e-12)
          ).astype(jnp.bfloat16)
    kn = (k * lax.rsqrt(jnp.sum(k * k, axis=-1, keepdims=True) + 1e-12)
          ).astype(jnp.bfloat16)

    # kv[g] = sum_m kn[g,m,:] (outer) v[g,m,:]  — bf16 MXU, f32 accumulation.
    kv = jnp.einsum('gmd,gme->gde', kn, v, preferred_element_type=jnp.float32)
    k_sum = jnp.sum(kn.astype(jnp.float32), axis=1, keepdims=True)    # (G, 1, D)
    v_sum = jnp.sum(v.astype(jnp.float32), axis=1, keepdims=True)     # (G, 1, D)
    n = jnp.sum(m, axis=1, keepdims=True)                             # (G, 1, 1)

    numerator = jnp.einsum('gmd,gde->gme', qn, kv.astype(jnp.bfloat16),
                           preferred_element_type=jnp.float32) + v_sum
    denominator = jnp.sum(qn.astype(jnp.float32) * k_sum, axis=-1,
                          keepdims=True) + n
    denominator = jnp.where(n > 0.0, denominator, 1.0)   # empty padded graph slots
    o_ref[...] = numerator * pl.reciprocal(denominator, approx=False)


def pallas_difformer_attn(q_pad, k_pad, v_pad, mask, group):
    b_pad, m, d = q_pad.shape
    spec = pl.BlockSpec((group, m, d), lambda g: (g, 0, 0))
    return pl.pallas_call(
        difformer_attn_kernel,
        out_shape=jax.ShapeDtypeStruct((b_pad, m, d), jnp.float32),
        grid=(b_pad // group,),
        in_specs=[spec, spec, spec,
                  pl.BlockSpec((group, m, 1), lambda g: (g, 0, 0))],
        out_specs=pl.BlockSpec((group, m, d), lambda g: (g, 0, 0)),
        compiler_params=pltpu.CompilerParams(
            dimension_semantics=("parallel",),
            vmem_limit_bytes=_VMEM_LIMIT),
    )(q_pad, k_pad, v_pad, mask)


# ----------------------------------------------------------------------------
# Parameters
# ----------------------------------------------------------------------------
def init_params(key, emb_dim, num_layer):
    params = {}
    k = key

    def nxt():
        nonlocal k
        k, sub = jax.random.split(k)
        return sub

    params["atom_emb"] = jax.random.normal(nxt(), (16, emb_dim), jnp.float32) * 0.1
    params["layers"] = []
    for _ in range(num_layer):
        layer = {
            "gcn_w": jax.random.normal(nxt(), (emb_dim, emb_dim), jnp.float32) * 0.1,
            "gcn_b": jax.random.normal(nxt(), (1, emb_dim), jnp.float32) * 0.1,
            "wq": jax.random.normal(nxt(), (emb_dim, emb_dim), jnp.float32) * 0.1,
            "bq": jax.random.normal(nxt(), (1, emb_dim), jnp.float32) * 0.1,
            "wk": jax.random.normal(nxt(), (emb_dim, emb_dim), jnp.float32) * 0.1,
            "bk": jax.random.normal(nxt(), (1, emb_dim), jnp.float32) * 0.1,
            "wv": jax.random.normal(nxt(), (emb_dim, emb_dim), jnp.float32) * 0.1,
            "bv": jax.random.normal(nxt(), (1, emb_dim), jnp.float32) * 0.1,
            "bn_gamma": jnp.ones((1, emb_dim), jnp.float32),
            "bn_beta": jnp.zeros((1, emb_dim), jnp.float32),
        }
        params["layers"].append(layer)
    params["ep_w"] = jax.random.normal(nxt(), (2 * emb_dim, 1), jnp.float32) * 0.1
    params["ep_b"] = jnp.zeros((1, 1), jnp.float32)
    return params


# ----------------------------------------------------------------------------
# Forward pass (glue: embedding, padding, adjacency + block ranges, gathers)
# ----------------------------------------------------------------------------
def difformer_forward(params, x_idx, edge_index, batch, pos, max_node, num_graphs,
                      alpha=0.5):
    n = x_idx.shape[0]
    d = params["atom_emb"].shape[1]
    n_pad = _round_up(n, ROW_TILE)

    # Graphs per attention grid step from a ~16 MiB VMEM working-set budget
    # (q/k/v bf16 + mask/out f32, x2 for double buffering); keep >=2 grid
    # blocks when possible so both v7x TensorCores get work.
    per_graph_bytes = max_node * d * (3 * 2 + 4) + max_node * 4
    group = max(1, (16 * 1024 * 1024) // (2 * per_graph_bytes))
    if num_graphs >= 2:
        group = min(group, (num_graphs + 1) // 2)
    group = max(1, min(group, max(num_graphs, 1)))
    b_pad = _round_up(max(num_graphs, 1), group)

    # Dense symmetric-normalized adjacency, self-loops on REAL nodes only
    # (padded rows/cols stay exactly zero -> enables the block-skip and keeps
    # padded data from leaking into real outputs). Cast ONCE to bf16.
    # TODO(synk): for very large N, replace this dense N^2 build with a
    # block-sparse tile-list representation fed through scalar prefetch.
    a = jnp.zeros((n_pad, n_pad), jnp.float32)
    a = a.at[edge_index[0], edge_index[1]].add(1.0)
    idx_n = jnp.arange(n, dtype=jnp.int32)
    a = a.at[idx_n, idx_n].add(1.0)
    deg = jnp.sum(a, axis=1)
    dinv = jnp.where(deg > 0.0, lax.rsqrt(jnp.maximum(deg, 1e-12)), 0.0)
    a_norm = (dinv[:, None] * a * dinv[None, :]).astype(jnp.bfloat16)

    # Exact per-row-tile nonzero-column block range (from edges + self column)
    # for the block-sparse skip inside gcn_combine.
    t_m = min(ROW_TILE, n_pad)
    t_k = _pick_tile(n_pad, MAX_K_TILE)
    n_rb, n_kb = n_pad // t_m, n_pad // t_k
    col_lo = jnp.full((n_pad,), n_pad, jnp.int32).at[:n].set(idx_n)
    col_lo = col_lo.at[edge_index[0]].min(edge_index[1].astype(jnp.int32))
    col_hi = jnp.full((n_pad,), -1, jnp.int32).at[:n].set(idx_n)
    col_hi = col_hi.at[edge_index[0]].max(edge_index[1].astype(jnp.int32))
    klo = jnp.clip(col_lo.reshape(n_rb, t_m).min(axis=1) // t_k,
                   0, n_kb - 1).astype(jnp.int32)
    khi = jnp.clip(col_hi.reshape(n_rb, t_m).max(axis=1) // t_k,
                   0, n_kb - 1).astype(jnp.int32)

    # Padded per-graph node mask (true node count in-kernel).
    mask = jnp.zeros((b_pad, max_node, 1), jnp.float32).at[batch, pos, 0].set(1.0)

    # Node features in flat layout, padded rows zero.
    h = jnp.zeros((n_pad, d), jnp.float32).at[:n].set(
        jnp.take(params["atom_emb"], x_idx, axis=0))

    for layer in params["layers"]:
        w_all = jnp.concatenate(
            [layer["gcn_w"], layer["wq"], layer["wk"], layer["wv"]],
            axis=1).astype(jnp.bfloat16)                                  # (D, 4D)
        b_all = jnp.concatenate(
            [layer["gcn_b"], layer["bq"], layer["bk"], layer["bv"]], axis=1)

        proj = pallas_fused_proj(h, w_all, b_all)                         # bf16 [n_pad, 4D]
        hw = proj[:, :d]                                                  # GCN branch (bf16)
        q = proj[:n, d:2 * d]
        kk = proj[:n, 2 * d:3 * d]
        v = proj[:n, 3 * d:]

        # Pad q/k/v (bf16) to the per-graph layout; padded rows stay zero.
        q_pad = jnp.zeros((b_pad, max_node, d), jnp.bfloat16).at[batch, pos].set(q)
        k_pad = jnp.zeros((b_pad, max_node, d), jnp.bfloat16).at[batch, pos].set(kk)
        v_pad = jnp.zeros((b_pad, max_node, d), jnp.bfloat16).at[batch, pos].set(v)

        x2_pad = pallas_difformer_attn(q_pad, k_pad, v_pad, mask, group)
        x2 = jnp.zeros((n_pad, d), jnp.float32).at[:n].set(x2_pad[batch, pos])

        # Block-sparse tiled A_norm @ hw + combine/residual/BN/ReLU epilogue.
        h = pallas_gcn_combine(a_norm, hw, x2, h,
                               layer["bn_gamma"], layer["bn_beta"],
                               klo, khi, alpha=alpha)

    # Edge predictor Linear(2D, 1): plain jnp (a 2-lane Pallas store buys nothing).
    h_real = h[:n]
    p_row = h_real @ params["ep_w"][:d, 0]
    p_col = h_real @ params["ep_w"][d:, 0]
    scores = p_row[edge_index[0]] + p_col[edge_index[1]] + params["ep_b"][0, 0]
    return scores[:, None]                                                # [E, 1]


# ----------------------------------------------------------------------------
# Example
# ----------------------------------------------------------------------------
if __name__ == "__main__":
    emb_dim = 32
    num_layer = 2
    n_nodes_list = [8, 6]          # two graphs
    num_graphs = len(n_nodes_list)
    max_node = max(n_nodes_list)
    N = sum(n_nodes_list)

    key = jax.random.PRNGKey(0)
    params = init_params(key, emb_dim, num_layer)

    # Node atom-type indices
    key, sub = jax.random.split(key)
    x_idx = jax.random.randint(sub, (N,), 0, 16)

    # batch assignment and within-graph position
    batch = jnp.concatenate([jnp.full((n,), i, jnp.int32)
                             for i, n in enumerate(n_nodes_list)])
    pos = jnp.concatenate([jnp.arange(n, dtype=jnp.int32) for n in n_nodes_list])

    # Ring edges (both directions) per graph
    src, dst = [], []
    offset = 0
    for n in n_nodes_list:
        for i in range(n):
            a, b = offset + i, offset + ((i + 1) % n)
            src += [a, b]
            dst += [b, a]
        offset += n
    edge_index = jnp.array([src, dst], dtype=jnp.int32)   # [2, E]

    out = difformer_forward(params, x_idx, edge_index, batch, pos,
                            max_node, num_graphs, alpha=0.5)
    out = jax.block_until_ready(out)
    assert out.shape == (edge_index.shape[1], 1)
    assert bool(jnp.all(jnp.isfinite(out)))
    print("KERNEL_OK")
</pallas_src>

<mosaic_0001>
module attributes {stable_mosaic.version = 11 : i64} {
  func.func @fused_proj_kernel(%arg0: i32, %arg1: memref<256x32xf32, #tpu.memory_space<vmem>>, %arg2: memref<32x128xbf16, #tpu.memory_space<vmem>>, %arg3: memref<1x128xf32, #tpu.memory_space<vmem>>, %arg4: memref<256x128xbf16, #tpu.memory_space<vmem>>) attributes {dimension_semantics = [#tpu.dimension_semantics<parallel>], iteration_bounds = array<i64: 1>, scalar_prefetch = 0 : i64, scratch_operands = 0 : i64, tpu.core_type = #tpu.core_type<tc>, window_params = [{transform_indices = @transform_0, window_bounds = array<i64: 256, 32>}, {pipeline_mode = #tpu.pipeline_mode<synchronous>, transform_indices = @transform_1, window_bounds = array<i64: 32, 128>}, {pipeline_mode = #tpu.pipeline_mode<synchronous>, transform_indices = @transform_2, window_bounds = array<i64: 1, 128>}, {transform_indices = @transform_3, window_bounds = array<i64: 256, 128>}]} {
    %c0 = arith.constant 0 : index
    %c0_0 = arith.constant 0 : index
    %0 = vector.load %arg1[%c0, %c0_0] : memref<256x32xf32, #tpu.memory_space<vmem>>, vector<256x32xf32>
    %1 = arith.truncf %0 : vector<256x32xf32> to vector<256x32xbf16>
    %c0_1 = arith.constant 0 : index
    %c0_2 = arith.constant 0 : index
    %2 = vector.load %arg2[%c0_1, %c0_2] : memref<32x128xbf16, #tpu.memory_space<vmem>>, vector<32x128xbf16>
    %cst = arith.constant dense<0.000000e+00> : vector<256x128xf32>
    %3 = tpu.matmul %1, %2, %cst {dimension_numbers = #tpu.dot_dimension_numbers<[1], [0], [0], [1], [0, 0, 1, 1], [], []>} : vector<256x32xbf16>, vector<32x128xbf16>, vector<256x128xf32> -> vector<256x128xf32>
    %c0_3 = arith.constant 0 : index
    %c0_4 = arith.constant 0 : index
    %4 = vector.load %arg3[%c0_3, %c0_4] : memref<1x128xf32, #tpu.memory_space<vmem>>, vector<1x128xf32>
    %5 = vector.broadcast %4 : vector<1x128xf32> to vector<256x128xf32>
    %6 = arith.addf %3, %5 : vector<256x128xf32>
    %7 = arith.truncf %6 : vector<256x128xf32> to vector<256x128xbf16>
    %c0_5 = arith.constant 0 : index
    %c0_6 = arith.constant 0 : index
    %8 = vector.load %arg4[%c0_5, %c0_6] : memref<256x128xbf16, #tpu.memory_space<vmem>>, vector<256x128xbf16>
    tpu.vector_store %arg4[%c0_5, %c0_6], %7 {strides = array<i32>} : memref<256x128xbf16, #tpu.memory_space<vmem>>, vector<256x128xbf16>,
    return
  }
  func.func @transform_0(%arg0: i32) -> (i32, i32) {
    %c0_i32 = arith.constant 0 : i32
    %c0_i32_0 = arith.constant 0 : i32
    return %arg0, %c0_i32 : i32, i32
  }
  func.func @transform_1(%arg0: i32) -> (i32, i32) {
    %c0_i32 = arith.constant 0 : i32
    %c0_i32_0 = arith.constant 0 : i32
    %c0_i32_1 = arith.constant 0 : i32
    return %c0_i32, %c0_i32_0 : i32, i32
  }
  func.func @transform_2(%arg0: i32) -> (i32, i32) {
    %c0_i32 = arith.constant 0 : i32
    %c0_i32_0 = arith.constant 0 : i32
    %c0_i32_1 = arith.constant 0 : i32
    return %c0_i32, %c0_i32_0 : i32, i32
  }
  func.func @transform_3(%arg0: i32) -> (i32, i32) {
    %c0_i32 = arith.constant 0 : i32
    %c0_i32_0 = arith.constant 0 : i32
    return %arg0, %c0_i32 : i32, i32
  }
}

</mosaic_0001>

<llo_original>
// kernel: tpu_custom_call.1
$region0: #{tpu_custom_call.1}
  #allocation0 [shape = 'u32[]', space=smem, size = 0x4, offset = 0x4, fixed_abs, tag = 'smem constant byte address 0x4 - core index']
  #allocation1 [shape = 'u32[144,128]{1,0:T(1,128)}', space=vmem, size = 0x12000, scoped, tag = 'internal scratch']
  %s0 = inlined_call_operand.vmem [shape: f32[256,32], index: 0, kind: input, shape index: {}]
  %s1 = inlined_call_operand.vmem [shape: bf16[32,128], index: 1, kind: input, shape index: {}]
  %s2 = inlined_call_operand.vmem [shape: f32[1,128], index: 2, kind: input, shape index: {}]
  %s3 = inlined_call_operand.hbm [shape: bf16[256,128], index: 3, kind: output, shape index: {}]
  %s4 = sld [smem:[#allocation0]]
  $region22: #{tpu_custom_call.1} parent=0
    _
  %s6 = ssub.s32 1, %s4
  %s7 = scalar_select 0, %s6, %s4
  $region1: #{tpu_custom_call.1} parent=0
    #allocation2 [shape = 'u8[65536]{0}', space=vmem, size = 0x10000, scoped, tag = 'output window, operand 0, single buffered']
    #allocation3 [shape = 's32[1]{0}', space=sflag, size = 0x4, scoped, tag = 'scoped memory for tpu_custom_call.1']
    %8 = vsyncpa [#allocation3], 0
    // Predicated region
    $region2: #{tpu_custom_call.1} parent=1 // pred_check
      _
    $region3: #{tpu_custom_call.1} parent=1 // pred_check_branch
      %10 = sbr.rel (0) target = $region5
    $region4: #{tpu_custom_call.1} parent=1 // pred_region
      _
    $region5: #{tpu_custom_call.1} parent=1 // pred_fallthru
      _
    // Predicated region
    $region6: #{tpu_custom_call.1} parent=1 // pred_check
      _
    $region7: #{tpu_custom_call.1} parent=1 // pred_check_branch
      %12 = sbr.rel (0) target = $region9
    $region8: #{tpu_custom_call.1} parent=1 // pred_region
      _
    $region9: #{tpu_custom_call.1} parent=1 // pred_fallthru
      _
    // Predicated region
    $region10: #{tpu_custom_call.1} parent=1 // pred_check
      _
    $region11: #{tpu_custom_call.1} parent=1 // pred_check_branch
      %14 = sbr.rel (0) target = $region13
    $region12: #{tpu_custom_call.1} parent=1 // pred_region
      _
    $region13: #{tpu_custom_call.1} parent=1 // pred_fallthru
      _
    %v16 = vld [vmem:[%s0] sm:$0xff]
    %v17 = vld [vmem:[%s0 + $0x8] sm:$0xff]
    %v18 = vld [vmem:[%s0 + $0x10] sm:$0xff]
    %v19 = vld [vmem:[%s0 + $0x18] sm:$0xff]
    %v20 = vld [vmem:[%s0 + $0x20] sm:$0xff]
    %v21 = vld [vmem:[%s0 + $0x28] sm:$0xff]
    %v22 = vld [vmem:[%s0 + $0x30] sm:$0xff]
    %v23 = vld [vmem:[%s0 + $0x38] sm:$0xff]
    %v24 = vld [vmem:[%s0 + $0x40] sm:$0xff]
    %v25 = vld [vmem:[%s0 + $0x48] sm:$0xff]
    %v26 = vld [vmem:[%s0 + $0x50] sm:$0xff]
    %v27 = vld [vmem:[%s0 + $0x58] sm:$0xff]
    %v28 = vld [vmem:[%s0 + $0x60] sm:$0xff]
    %v29 = vld [vmem:[%s0 + $0x68] sm:$0xff]
    %v30 = vld [vmem:[%s0 + $0x70] sm:$0xff]
    %v31 = vld [vmem:[%s0 + $0x78] sm:$0xff]
    %v32 = vld [vmem:[%s0 + $0x80] sm:$0xff]
    %v33 = vld [vmem:[%s0 + $0x88] sm:$0xff]
    %v34 = vld [vmem:[%s0 + $0x90] sm:$0xff]
    %v35 = vld [vmem:[%s0 + $0x98] sm:$0xff]
    %v36 = vld [vmem:[%s0 + $0xa0] sm:$0xff]
    %v37 = vld [vmem:[%s0 + $0xa8] sm:$0xff]
    %v38 = vld [vmem:[%s0 + $0xb0] sm:$0xff]
    %v39 = vld [vmem:[%s0 + $0xb8] sm:$0xff]
    %v40 = vld [vmem:[%s0 + $0xc0] sm:$0xff]
    %v41 = vld [vmem:[%s0 + $0xc8] sm:$0xff]
    %v42 = vld [vmem:[%s0 + $0xd0] sm:$0xff]
    %v43 = vld [vmem:[%s0 + $0xd8] sm:$0xff]
    %v44 = vld [vmem:[%s0 + $0xe0] sm:$0xff]
    %v45 = vld [vmem:[%s0 + $0xe8] sm:$0xff]
    %v46 = vld [vmem:[%s0 + $0xf0] sm:$0xff]
    %v47 = vld [vmem:[%s0 + $0xf8] sm:$0xff]
    %v48 = vpack.c.bf16 %v17, %v16
    %v49 = vpack.c.bf16 %v19, %v18
    %v50 = vpack.c.bf16 %v21, %v20
    %v51 = vpack.c.bf16 %v23, %v22
    %v52 = vpack.c.bf16 %v25, %v24
    %v53 = vpack.c.bf16 %v27, %v26
    %v54 = vpack.c.bf16 %v29, %v28
    %v55 = vpack.c.bf16 %v31, %v30
    %v56 = vpack.c.bf16 %v33, %v32
    %v57 = vpack.c.bf16 %v35, %v34
    %v58 = vpack.c.bf16 %v37, %v36
    %v59 = vpack.c.bf16 %v39, %v38
    %v60 = vpack.c.bf16 %v41, %v40
    %v61 = vpack.c.bf16 %v43, %v42
    %v62 = vpack.c.bf16 %v45, %v44
    %v63 = vpack.c.bf16 %v47, %v46
    %v64 = vld [vmem:[%s1] sm:$0xf]
    %v65 = vld [vmem:[%s1 + $0x4] sm:$0xf]
    %v66 = vld [vmem:[%s1 + $0x8] sm:$0xf]
    %v67 = vld [vmem:[%s1 + $0xc] sm:$0xf]
    %v68 = vld [vmem:[%s2] sm:$0x1]
    %v70 = vlaneseq
    %v71 = vshrl.u32 %v70, 7
    %v72 = vsub.s32 0, %v71
    %v73 = vrot.slane %v68, %v72
    %v79 = vunpack.c.l.b16 %v64
    %v80 = vunpack.c.l.b16 %v65
    %v81 = vunpack.c.l.b16 %v66
    %v82 = vunpack.c.l.b16 %v67
    %v83 = vpack.c.b16 %v80, %v79
    %v84 = vpack.c.b16 %v82, %v81
    %vm87 = vcmask 261120
    %v89 = vsel %vm87, %v48, 0
    %v92 = vsel %vm87, %v49, 0
    %v95 = vsel %vm87, %v50, 0
    %v98 = vsel %vm87, %v51, 0
    %v101 = vsel %vm87, %v52, 0
    %v104 = vsel %vm87, %v53, 0
    %v107 = vsel %vm87, %v54, 0
    %v110 = vsel %vm87, %v55, 0
    %v113 = vsel %vm87, %v56, 0
    %v116 = vsel %vm87, %v57, 0
    %v119 = vsel %vm87, %v58, 0
    %v122 = vsel %vm87, %v59, 0
    %v125 = vsel %vm87, %v60, 0
    %v128 = vsel %vm87, %v61, 0
    %v131 = vsel %vm87, %v62, 0
    %v134 = vsel %vm87, %v63, 0
    %136 = vmatprep.subr.bf16.mxu0 0
    %137 = vmatpush1.bf16.msra.mxu0 %v83
    %138 = vmatprep.subr.bf16.mxu0 0
    %139 = vmatpush1.bf16.msra.mxu0 %v84
    %140 = vmatprep.subr.bf16.mxu0 0
    %141 = vmatpush1.bf16.msra.mxu0 0
    %142 = vmatprep.subr.bf16.mxu0 0
    %143 = vmatpush1.bf16.msra.mxu0 0
    %144 = vmatprep.subr.bf16.mxu0 0
    %145 = vmatpush1.bf16.msra.mxu0 0
    %146 = vmatprep.subr.bf16.mxu0 0
    %147 = vmatpush1.bf16.msra.mxu0 0
    %148 = vmatprep.subr.bf16.mxu0 0
    %149 = vmatpush1.bf16.msra.mxu0 0
    %150 = vmatprep.subr.bf16.mxu0 0
    %151 = vmatpush1.bf16.msra.mxu0 0
    %152 = vmatprep.subr.bf16.mxu0 0
    %153 = vmatpush1.bf16.msra.mxu0 0
    %154 = vmatprep.subr.bf16.mxu0 0
    %155 = vmatpush1.bf16.msra.mxu0 0
    %156 = vmatprep.subr.bf16.mxu0 0
    %157 = vmatpush1.bf16.msra.mxu0 0
    %158 = vmatprep.subr.bf16.mxu0 0
    %159 = vmatpush1.bf16.msra.mxu0 0
    %160 = vmatprep.subr.bf16.mxu0 0
    %161 = vmatpush1.bf16.msra.mxu0 0
    %162 = vmatprep.subr.bf16.mxu0 0
    %163 = vmatpush1.bf16.msra.mxu0 0
    %164 = vmatprep.subr.bf16.mxu0 0
    %165 = vmatpush1.bf16.msra.mxu0 0
    %166 = vmatprep.subr.bf16.mxu0 0
    %167 = vmatpush1.bf16.msra.mxu0 0
    %168 = vmatprep.mubr.bf16.mxu0 0
    %169 = vmatmul.mubr.bf16.gmra.mrb[0].mxu0 %v89
    %v170 = vpop.f32.mrb[0].mxu0
    %v171 = vadd.f32 %v73, %v170
    %v172 = vpop.f32.mrb[0].mxu0
    %v173 = vpop.f32.mrb[0].mxu0
    %v174 = vadd.f32 %v73, %v173
    %v175 = vpop.f32.mrb[0].mxu0
    %176 = vmatprep.mubr.bf16.mxu0 0
    %177 = vmatmul.mubr.bf16.gmra.mrb[0].mxu0 %v92
    %v178 = vpop.f32.mrb[0].mxu0
    %v179 = vadd.f32 %v73, %v178
    %v180 = vpop.f32.mrb[0].mxu0
    %v181 = vpop.f32.mrb[0].mxu0
    %v182 = vadd.f32 %v73, %v181
    %v183 = vpop.f32.mrb[0].mxu0
    %184 = vmatprep.mubr.bf16.mxu0 0
    %185 = vmatmul.mubr.bf16.gmra.mrb[0].mxu0 %v95
    %v186 = vpop.f32.mrb[0].mxu0
    %v187 = vadd.f32 %v73, %v186
    %v188 = vpop.f32.mrb[0].mxu0
    %v189 = vpop.f32.mrb[0].mxu0
    %v190 = vadd.f32 %v73, %v189
    %v191 = vpop.f32.mrb[0].mxu0
    %192 = vmatprep.mubr.bf16.mxu0 0
    %193 = vmatmul.mubr.bf16.gmra.mrb[0].mxu0 %v98
    %v194 = vpop.f32.mrb[0].mxu0
    %v195 = vadd.f32 %v73, %v194
    %v196 = vpop.f32.mrb[0].mxu0
    %v197 = vpop.f32.mrb[0].mxu0
    %v198 = vadd.f32 %v73, %v197
    %v199 = vpop.f32.mrb[0].mxu0
    %200 = vmatprep.mubr.bf16.mxu0 0
    %201 = vmatmul.mubr.bf16.gmra.mrb[0].mxu0 %v101
    %v202 = vpop.f32.mrb[0].mxu0
    %v203 = vadd.f32 %v73, %v202
    %v204 = vpop.f32.mrb[0].mxu0
    %v205 = vpop.f32.mrb[0].mxu0
    %v206 = vadd.f32 %v73, %v205
    %v207 = vpop.f32.mrb[0].mxu0
    %208 = vmatprep.mubr.bf16.mxu0 0
    %209 = vmatmul.mubr.bf16.gmra.mrb[0].mxu0 %v104
    %v210 = vpop.f32.mrb[0].mxu0
    %v211 = vadd.f32 %v73, %v210
    %v212 = vpop.f32.mrb[0].mxu0
    %v213 = vpop.f32.mrb[0].mxu0
    %v214 = vadd.f32 %v73, %v213
    %v215 = vpop.f32.mrb[0].mxu0
    %216 = vmatprep.mubr.bf16.mxu0 0
    %217 = vmatmul.mubr.bf16.gmra.mrb[0].mxu0 %v107
    %v218 = vpop.f32.mrb[0].mxu0
    %v219 = vadd.f32 %v73, %v218
    %v220 = vpop.f32.mrb[0].mxu0
    %v221 = vpop.f32.mrb[0].mxu0
    %v222 = vadd.f32 %v73, %v221
    %v223 = vpop.f32.mrb[0].mxu0
    %224 = vmatprep.mubr.bf16.mxu0 0
    %225 = vmatmul.mubr.bf16.gmra.mrb[0].mxu0 %v110
    %v226 = vpop.f32.mrb[0].mxu0
    %v227 = vadd.f32 %v73, %v226
    %v228 = vpop.f32.mrb[0].mxu0
    %v229 = vpop.f32.mrb[0].mxu0
    %v230 = vadd.f32 %v73, %v229
    %v231 = vpop.f32.mrb[0].mxu0
    %232 = vmatprep.mubr.bf16.mxu0 0
    %233 = vmatmul.mubr.bf16.gmra.mrb[0].mxu0 %v113
    %v234 = vpop.f32.mrb[0].mxu0
    %v235 = vadd.f32 %v73, %v234
    %v236 = vpop.f32.mrb[0].mxu0
    %v237 = vpop.f32.mrb[0].mxu0
    %v238 = vadd.f32 %v73, %v237
    %v239 = vpop.f32.mrb[0].mxu0
    %240 = vmatprep.mubr.bf16.mxu0 0
    %241 = vmatmul.mubr.bf16.gmra.mrb[0].mxu0 %v116
    %v242 = vpop.f32.mrb[0].mxu0
    %v243 = vadd.f32 %v73, %v242
    %v244 = vpop.f32.mrb[0].mxu0
    %v245 = vpop.f32.mrb[0].mxu0
    %v246 = vadd.f32 %v73, %v245
    %v247 = vpop.f32.mrb[0].mxu0
    %248 = vmatprep.mubr.bf16.mxu0 0
    %249 = vmatmul.mubr.bf16.gmra.mrb[0].mxu0 %v119
    %v250 = vpop.f32.mrb[0].mxu0
    %v251 = vadd.f32 %v73, %v250
    %v252 = vpop.f32.mrb[0].mxu0
    %v253 = vpop.f32.mrb[0].mxu0
    %v254 = vadd.f32 %v73, %v253
    %v255 = vpop.f32.mrb[0].mxu0
    %256 = vmatprep.mubr.bf16.mxu0 0
    %257 = vmatmul.mubr.bf16.gmra.mrb[0].mxu0 %v122
    %v258 = vpop.f32.mrb[0].mxu0
    %v259 = vadd.f32 %v73, %v258
    %v260 = vpop.f32.mrb[0].mxu0
    %v261 = vpop.f32.mrb[0].mxu0
    %v262 = vadd.f32 %v73, %v261
    %v263 = vpop.f32.mrb[0].mxu0
    %264 = vmatprep.mubr.bf16.mxu0 0
    %265 = vmatmul.mubr.bf16.gmra.mrb[0].mxu0 %v125
    %v266 = vpop.f32.mrb[0].mxu0
    %v267 = vadd.f32 %v73, %v266
    %v268 = vpop.f32.mrb[0].mxu0
    %v269 = vpop.f32.mrb[0].mxu0
    %v270 = vadd.f32 %v73, %v269
    %v271 = vpop.f32.mrb[0].mxu0
    %272 = vmatprep.mubr.bf16.mxu0 0
    %273 = vmatmul.mubr.bf16.gmra.mrb[0].mxu0 %v128
    %v274 = vpop.f32.mrb[0].mxu0
    %v275 = vadd.f32 %v73, %v274
    %v276 = vpop.f32.mrb[0].mxu0
    %v277 = vpop.f32.mrb[0].mxu0
    %v278 = vadd.f32 %v73, %v277
    %v279 = vpop.f32.mrb[0].mxu0
    %280 = vmatprep.mubr.bf16.mxu0 0
    %281 = vmatmul.mubr.bf16.gmra.mrb[0].mxu0 %v131
    %v282 = vpop.f32.mrb[0].mxu0
    %v283 = vadd.f32 %v73, %v282
    %v284 = vpop.f32.mrb[0].mxu0
    %v285 = vpop.f32.mrb[0].mxu0
    %v286 = vadd.f32 %v73, %v285
    %v287 = vpop.f32.mrb[0].mxu0
    %288 = vmatprep.mubr.bf16.mxu0 0
    %289 = vmatmul.mubr.bf16.gmra.mrb[0].mxu0 %v134
    %v290 = vpop.f32.mrb[0].mxu0
    %v291 = vadd.f32 %v73, %v290
    %v292 = vpop.f32.mrb[0].mxu0
    %v293 = vpop.f32.mrb[0].mxu0
    %v294 = vadd.f32 %v73, %v293
    %v295 = vpop.f32.mrb[0].mxu0
    %296 = vdwg.mxu0
    %v297 = vpack.c.bf16 %v174, %v171
    %v298 = vpack.c.bf16 %v182, %v179
    %v299 = vpack.c.bf16 %v190, %v187
    %v300 = vpack.c.bf16 %v198, %v195
    %v301 = vpack.c.bf16 %v206, %v203
    %v302 = vpack.c.bf16 %v214, %v211
    %v303 = vpack.c.bf16 %v222, %v219
    %v304 = vpack.c.bf16 %v230, %v227
    %v305 = vpack.c.bf16 %v238, %v235
    %v306 = vpack.c.bf16 %v246, %v243
    %v307 = vpack.c.bf16 %v254, %v251
    %v308 = vpack.c.bf16 %v262, %v259
    %v309 = vpack.c.bf16 %v270, %v267
    %v310 = vpack.c.bf16 %v278, %v275
    %v311 = vpack.c.bf16 %v286, %v283
    %v312 = vpack.c.bf16 %v294, %v291
    %v329 = vunpack.c.l.b16 %v297
    %v330 = vunpack.c.h.b16 %v297
    %v331 = vunpack.c.l.b16 %v298
    %v332 = vunpack.c.h.b16 %v298
    %v333 = vunpack.c.l.b16 %v299
    %v334 = vunpack.c.h.b16 %v299
    %v335 = vunpack.c.l.b16 %v300
    %v336 = vunpack.c.h.b16 %v300
    %v337 = vunpack.c.l.b16 %v301
    %v338 = vunpack.c.h.b16 %v301
    %v339 = vunpack.c.l.b16 %v302
    %v340 = vunpack.c.h.b16 %v302
    %v341 = vunpack.c.l.b16 %v303
    %v342 = vunpack.c.h.b16 %v303
    %v343 = vunpack.c.l.b16 %v304
    %v344 = vunpack.c.h.b16 %v304
    %v345 = vunpack.c.l.b16 %v305
    %v346 = vunpack.c.h.b16 %v305
    %v347 = vunpack.c.l.b16 %v306
    %v348 = vunpack.c.h.b16 %v306
    %v349 = vunpack.c.l.b16 %v307
    %v350 = vunpack.c.h.b16 %v307
    %v351 = vunpack.c.l.b16 %v308
    %v352 = vunpack.c.h.b16 %v308
    %v353 = vunpack.c.l.b16 %v309
    %v354 = vunpack.c.h.b16 %v309
    %v355 = vunpack.c.l.b16 %v310
    %v356 = vunpack.c.h.b16 %v310
    %v357 = vunpack.c.l.b16 %v311
    %v358 = vunpack.c.h.b16 %v311
    %v359 = vunpack.c.l.b16 %v312
    %v360 = vunpack.c.h.b16 %v312
    %v361 = vpack.c.b16 %v329, %v329
    %v362 = vpack.c.b16 %v330, %v330
    %v363 = vpack.c.b16 %v331, %v331
    %v364 = vpack.c.b16 %v332, %v332
    %v365 = vpack.c.b16 %v333, %v333
    %v366 = vpack.c.b16 %v334, %v334
    %v367 = vpack.c.b16 %v335, %v335
    %v368 = vpack.c.b16 %v336, %v336
    %v369 = vpack.c.b16 %v337, %v337
    %v370 = vpack.c.b16 %v338, %v338
    %v371 = vpack.c.b16 %v339, %v339
    %v372 = vpack.c.b16 %v340, %v340
    %v373 = vpack.c.b16 %v341, %v341
    %v374 = vpack.c.b16 %v342, %v342
    %v375 = vpack.c.b16 %v343, %v343
    %v376 = vpack.c.b16 %v344, %v344
    %v377 = vpack.c.b16 %v345, %v345
    %v378 = vpack.c.b16 %v346, %v346
    %v379 = vpack.c.b16 %v347, %v347
    %v380 = vpack.c.b16 %v348, %v348
    %v381 = vpack.c.b16 %v349, %v349
    %v382 = vpack.c.b16 %v350, %v350
    %v383 = vpack.c.b16 %v351, %v351
    %v384 = vpack.c.b16 %v352, %v352
    %v385 = vpack.c.b16 %v353, %v353
    %v386 = vpack.c.b16 %v354, %v354
    %v387 = vpack.c.b16 %v355, %v355
    %v388 = vpack.c.b16 %v356, %v356
    %v389 = vpack.c.b16 %v357, %v357
    %v390 = vpack.c.b16 %v358, %v358
    %v391 = vpack.c.b16 %v359, %v359
    %v392 = vpack.c.b16 %v360, %v360
    %425 = vst [vmem:[#allocation2] sm:$0xf] %v361
    %426 = vst [vmem:[#allocation2 + $0x4] sm:$0xf] %v362
    %427 = vst [vmem:[#allocation2 + $0x8] sm:$0xf] %v363
    %428 = vst [vmem:[#allocation2 + $0xc] sm:$0xf] %v364
    %429 = vst [vmem:[#allocation2 + $0x10] sm:$0xf] %v365
    %430 = vst [vmem:[#allocation2 + $0x14] sm:$0xf] %v366
    %431 = vst [vmem:[#allocation2 + $0x18] sm:$0xf] %v367
    %432 = vst [vmem:[#allocation2 + $0x1c] sm:$0xf] %v368
    %433 = vst [vmem:[#allocation2 + $0x20] sm:$0xf] %v369
    %434 = vst [vmem:[#allocation2 + $0x24] sm:$0xf] %v370
    %435 = vst [vmem:[#allocation2 + $0x28] sm:$0xf] %v371
    %436 = vst [vmem:[#allocation2 + $0x2c] sm:$0xf] %v372
    %437 = vst [vmem:[#allocation2 + $0x30] sm:$0xf] %v373
    %438 = vst [vmem:[#allocation2 + $0x34] sm:$0xf] %v374
    %439 = vst [vmem:[#allocation2 + $0x38] sm:$0xf] %v375
    %440 = vst [vmem:[#allocation2 + $0x3c] sm:$0xf] %v376
    %441 = vst [vmem:[#allocation2 + $0x40] sm:$0xf] %v377
    %442 = vst [vmem:[#allocation2 + $0x44] sm:$0xf] %v378
    %443 = vst [vmem:[#allocation2 + $0x48] sm:$0xf] %v379
    %444 = vst [vmem:[#allocation2 + $0x4c] sm:$0xf] %v380
    %445 = vst [vmem:[#allocation2 + $0x50] sm:$0xf] %v381
    %446 = vst [vmem:[#allocation2 + $0x54] sm:$0xf] %v382
    %447 = vst [vmem:[#allocation2 + $0x58] sm:$0xf] %v383
    %448 = vst [vmem:[#allocation2 + $0x5c] sm:$0xf] %v384
    %449 = vst [vmem:[#allocation2 + $0x60] sm:$0xf] %v385
    %450 = vst [vmem:[#allocation2 + $0x64] sm:$0xf] %v386
    %451 = vst [vmem:[#allocation2 + $0x68] sm:$0xf] %v387
    %452 = vst [vmem:[#allocation2 + $0x6c] sm:$0xf] %v388
    %453 = vst [vmem:[#allocation2 + $0x70] sm:$0xf] %v389
    %454 = vst [vmem:[#allocation2 + $0x74] sm:$0xf] %v390
    %455 = vst [vmem:[#allocation2 + $0x78] sm:$0xf] %v391
    %456 = vst [vmem:[#allocation2 + $0x7c] sm:$0xf] %v392
    // Predicated region
    $region14: #{tpu_custom_call.1} parent=1 // pred_check
      _
    $region15: #{tpu_custom_call.1} parent=1 // pred_check_branch
      %458 = sbr.rel (0) target = $region17
    $region16: #{tpu_custom_call.1} parent=1 // pred_region
      %s460 = ssub.s32 2048, 2048
      %461 = vsyncadd [#allocation3], %s460
      %s462 = sshll.u32 [#allocation2], 4
      %s463 = int_to_ptr.vmem [resolvable:$true] %s462
      %468 = dma.vmem_to_hbm [thread:$0]  %s463, 2048, %s3, [#allocation3], 64, 64, 4
    $region17: #{tpu_custom_call.1} parent=1 // pred_fallthru
      _
    // Predicated region
    $region18: #{tpu_custom_call.1} parent=1 // pred_check
      _
    $region19: #{tpu_custom_call.1} parent=1 // pred_check_branch
      %470 = sbr.rel (0) target = $region21
    $region20: #{tpu_custom_call.1} parent=1 // pred_region
      %471 = dma.done [#allocation3], 2048
    $region21: #{tpu_custom_call.1} parent=1 // pred_fallthru
      _
    %472 = vsyncpa [#allocation3], 1

</llo_original>
